<compile_context>
chip_gen: v5e
topology: v5e:2x2
jax: 0.10.0
libtpu: 0.0.40
codegen_flags: <defaults>
</compile_context>

<pallas_src>
import functools

import jax
import jax.numpy as jnp
from jax.experimental import pallas as pl
from jax.experimental.pallas import tpu as pltpu


def _channel_embed_kernel(x_ref, wcat_ref, w3_ref, pmid_ref, pout_ref, out_ref, *, W):
    B, _, HW = x_ref.shape
    Cout, Cmid = w3_ref.shape

    # ---- hoisted parameter loads: once per grid step, sliced from register copies ----
    wcat = wcat_ref[...]                          # (Cout + Cmid, Cin) bf16
    w3 = w3_ref[...]                              # (Cout, Cmid)       bf16
    pm = pmid_ref[...]                            # (Cmid, 11) f32: [9 dw taps | b1 | b_dw]
    po = pout_ref[...]                            # (Cout, 3)  f32: [s2 | s12 | t12]
    taps = [pm[:, k:k + 1] for k in range(9)]     # per-channel depthwise tap weights
    b1 = pm[:, 9:10]
    bdw = pm[:, 10:11]
    s2 = po[:, 0:1]
    s12 = po[:, 1:2]
    t12 = po[:, 2:3]

    # ---- depthwise border masks at shape (1, HW); jnp.where broadcasts over channels ----
    p = jax.lax.broadcasted_iota(jnp.int32, (1, HW), 1)          # flat per-image pixel index
    if W & (W - 1) == 0:
        wcol = jnp.bitwise_and(p, W - 1)                         # p % W (W power of two)
    else:
        wcol = jax.lax.rem(p, jnp.full_like(p, W))
    row_ok = {-1: p >= W, 0: None, 1: p < (HW - W)}
    col_ok = {-1: wcol >= 1, 0: None, 1: wcol <= (W - 2)}
    masks = {}
    for dy in (-1, 0, 1):
        for dx in (-1, 0, 1):
            m = row_ok[dy]
            if col_ok[dx] is not None:
                m = col_ok[dx] if m is None else jnp.logical_and(m, col_ok[dx])
            masks[(dy, dx)] = m

    # ---- statically unrolled batch block: B images per grid step ----
    # NOTE: residual (Cout, HW) f32 is held in vregs across the depthwise + second matmul;
    # at production sizes (Cout*HW large) stage residual*s2 early instead of keeping it live.
    for b in range(B):
        xb = x_ref[b].astype(jnp.bfloat16)                       # (Cin, HW)

        # fused [residual 1x1 | channel_embed[0] 1x1]: one bf16 MXU matmul, f32 acc
        rt = jnp.dot(wcat, xb, preferred_element_type=jnp.float32)   # (Cout+Cmid, HW) f32
        residual = rt[:Cout, :]
        t = rt[Cout:, :] + b1                                    # (Cmid, HW), lane-broadcast bias

        # channel_embed[1]: depthwise 3x3, stride 1, zero pad 1 -- 9 lane rolls (XLU) + masks
        acc = None
        k = 0
        for dy in (-1, 0, 1):
            for dx in (-1, 0, 1):
                off = dy * W + dx
                v = t if off == 0 else pltpu.roll(t, (-off) % HW, axis=1)
                m = masks[(dy, dx)]
                if m is not None:
                    v = jnp.where(m, v, 0.0)
                contrib = v * taps[k]
                acc = contrib if acc is None else acc + contrib
                k += 1

        # channel_embed[2]: ReLU (f32, VPU)
        acc = jnp.maximum(acc + bdw, 0.0)                        # (Cmid, HW)

        # channel_embed[3]: 1x1 conv (bf16 MXU, f32 acc)
        y3 = jnp.dot(w3, acc.astype(jnp.bfloat16),
                     preferred_element_type=jnp.float32)         # (Cout, HW)

        # folded BN epilogue: out = BN2(residual + BN1(y3 + b3))
        out = residual * s2 + y3 * s12 + t12
        out_ref[b] = out.astype(out_ref.dtype)                   # lane-dense store


def _pick_batch_block(N, HW, Cin, Cout, *, max_unroll=8, vmem_budget_bytes=12 << 20):
    """Largest divisor of N that (a) keeps the double-buffered x+out blocks within a VMEM
    budget safe for v7x (64 MiB phys / 32 MiB scoped), (b) keeps the in-kernel unroll small,
    and (c) keeps >=2 grid steps when N allows (pipeline overlap / megacore)."""
    divisors = [d for d in range(1, N + 1) if N % d == 0]

    def block_bytes(d):
        return 2 * d * HW * (Cin + Cout) * 4     # double-buffered f32 x + out blocks

    feasible = [d for d in divisors if d <= max_unroll and block_bytes(d) <= vmem_budget_bytes]
    if not feasible:
        return 1
    if N >= 4:
        multi = [d for d in feasible if N // d >= 2]
        if multi:
            return max(multi)
    return max(feasible)


def prepare_params(torch_params, eps=1e-5):
    """Fold eval-mode BNs to scale/shift (and fold the two BNs together), fuse residual + first
    1x1 conv weights, pack small per-channel params into two arrays, cast MXU weights to bf16."""
    (w_res, w1, b1, w_dw, b_dw, w3, b3,
     g1, be1, mu1, var1, g2, be2, mu2, var2) = torch_params
    Cout, Cin = w_res.shape[0], w_res.shape[1]
    Cmid = w1.shape[0]

    wcat = jnp.concatenate(
        [w_res.reshape(Cout, Cin), w1.reshape(Cmid, Cin)], axis=0
    ).astype(jnp.bfloat16)                                       # (Cout + Cmid, Cin)
    w3k = jnp.asarray(w3, jnp.float32).reshape(Cout, Cmid).astype(jnp.bfloat16)

    pmid = jnp.concatenate(
        [jnp.asarray(w_dw, jnp.float32).reshape(Cmid, 9),
         jnp.asarray(b1, jnp.float32).reshape(Cmid, 1),
         jnp.asarray(b_dw, jnp.float32).reshape(Cmid, 1)], axis=1)   # (Cmid, 11)

    s1 = g1 / jnp.sqrt(var1 + eps)
    t1 = be1 - mu1 * s1
    s2 = g2 / jnp.sqrt(var2 + eps)
    t2 = be2 - mu2 * s2
    s12 = s1 * s2
    t12 = (b3 * s1 + t1) * s2 + t2
    pout = jnp.stack([s2, s12, t12], axis=1).astype(jnp.float32)     # (Cout, 3)

    return (wcat, w3k, pmid, pout)


def channel_embed_forward(x_nchw, kparams):
    """x_nchw: (N, Cin, H, W) float32 (PyTorch layout). Returns (N, Cout, H, W) float32."""
    wcat, w3, pmid, pout = kparams
    N, Cin, H, W = x_nchw.shape
    HW = H * W
    Cout, Cmid = w3.shape
    Ctot = wcat.shape[0]

    B_blk = _pick_batch_block(N, HW, Cin, Cout)
    x = x_nchw.reshape(N, Cin, HW)                               # free reshape, no transpose

    const2d = lambda r, c: pl.BlockSpec((r, c), lambda g: (0, 0))
    out = pl.pallas_call(
        functools.partial(_channel_embed_kernel, W=W),
        out_shape=jax.ShapeDtypeStruct((N, Cout, HW), jnp.float32),
        grid_spec=pltpu.PrefetchScalarGridSpec(
            num_scalar_prefetch=0,
            grid=(N // B_blk,),
            in_specs=[
                pl.BlockSpec((B_blk, Cin, HW), lambda g: (g, 0, 0)),  # batch block of x
                const2d(Ctot, Cin),                                   # fused [w_res | w1] (bf16)
                const2d(Cout, Cmid),                                  # w3 (bf16)
                const2d(Cmid, 11),                                    # [dw taps | b1 | b_dw]
                const2d(Cout, 3),                                     # [s2 | s12 | t12]
            ],
            out_specs=pl.BlockSpec((B_blk, Cout, HW), lambda g: (g, 0, 0)),
        ),
        compiler_params=pltpu.CompilerParams(
            dimension_semantics=("parallel",),                   # batch blocks independent
            vmem_limit_bytes=32 * 1024 * 1024),
    )(x, wcat, w3, pmid, pout)

    return out.reshape(N, Cout, H, W)                            # free reshape back to NCHW


def reference(x_nchw, torch_params, eps=1e-5):
    """Pure-JAX reference of the module's forward (eval-mode BN). Matmul inputs are rounded to
    bf16 to match the MXU-native precision of the kernel (f32 accumulation), so the remaining
    kernel-vs-reference difference is accumulation order / constant-folding rounding only."""
    (w_res, w1, b1, w_dw, b_dw, w3, b3,
     g1, be1, mu1, var1, g2, be2, mu2, var2) = torch_params
    N, Cin, H, W = x_nchw.shape
    Cout = w_res.shape[0]
    Cmid = w1.shape[0]
    r16 = lambda a: a.astype(jnp.bfloat16).astype(jnp.float32)
    hi = jax.lax.Precision.HIGHEST

    x = r16(x_nchw.astype(jnp.float32))
    residual = jnp.einsum('oc,nchw->nohw', r16(w_res.reshape(Cout, Cin)), x, precision=hi)
    t = jnp.einsum('oc,nchw->nohw', r16(w1.reshape(Cmid, Cin)), x, precision=hi)
    t = t + b1.reshape(1, Cmid, 1, 1)

    tp = jnp.pad(t, ((0, 0), (0, 0), (1, 1), (1, 1)))
    acc = jnp.zeros_like(t)
    for i in range(3):
        for j in range(3):
            acc = acc + tp[:, :, i:i + H, j:j + W] * w_dw[:, 0, i, j].reshape(1, Cmid, 1, 1)
    acc = jnp.maximum(acc + b_dw.reshape(1, Cmid, 1, 1), 0.0)

    y = jnp.einsum('oc,nchw->nohw', r16(w3.reshape(Cout, Cmid)), r16(acc), precision=hi)
    y = y + b3.reshape(1, Cout, 1, 1)

    s1 = g1 / jnp.sqrt(var1 + eps); t1 = be1 - mu1 * s1
    s2 = g2 / jnp.sqrt(var2 + eps); t2 = be2 - mu2 * s2
    y = y * s1.reshape(1, Cout, 1, 1) + t1.reshape(1, Cout, 1, 1)
    out = (residual + y) * s2.reshape(1, Cout, 1, 1) + t2.reshape(1, Cout, 1, 1)
    return out


def make_params(Cin, Cout, Cmid, key):
    """PyTorch-shaped parameters for ChannelEmbed (conv weights + eval-mode BN stats)."""
    ks = jax.random.split(key, 15)
    w_res = 0.1 * jax.random.normal(ks[0], (Cout, Cin, 1, 1), jnp.float32)
    w1    = 0.1 * jax.random.normal(ks[1], (Cmid, Cin, 1, 1), jnp.float32)
    b1    = 0.1 * jax.random.normal(ks[2], (Cmid,), jnp.float32)
    w_dw  = 0.1 * jax.random.normal(ks[3], (Cmid, 1, 3, 3), jnp.float32)
    b_dw  = 0.1 * jax.random.normal(ks[4], (Cmid,), jnp.float32)
    w3    = 0.1 * jax.random.normal(ks[5], (Cout, Cmid, 1, 1), jnp.float32)
    b3    = 0.1 * jax.random.normal(ks[6], (Cout,), jnp.float32)
    g1   = 1.0 + 0.1 * jax.random.normal(ks[7], (Cout,), jnp.float32)
    be1  = 0.1 * jax.random.normal(ks[8], (Cout,), jnp.float32)
    mu1  = 0.1 * jax.random.normal(ks[9], (Cout,), jnp.float32)
    var1 = 1.0 + 0.5 * jax.random.uniform(ks[10], (Cout,), jnp.float32)
    g2   = 1.0 + 0.1 * jax.random.normal(ks[11], (Cout,), jnp.float32)
    be2  = 0.1 * jax.random.normal(ks[12], (Cout,), jnp.float32)
    mu2  = 0.1 * jax.random.normal(ks[13], (Cout,), jnp.float32)
    var2 = 1.0 + 0.5 * jax.random.uniform(ks[14], (Cout,), jnp.float32)
    return (w_res, w1, b1, w_dw, b_dw, w3, b3,
            g1, be1, mu1, var1, g2, be2, mu2, var2)


if __name__ == "__main__":
    N, Cin, Cout, H, W = 2, 4, 8, 16, 16
    reduction = 1
    Cmid = Cout // reduction

    key = jax.random.PRNGKey(0)
    k_params, k_x = jax.random.split(key)
    torch_params = make_params(Cin, Cout, Cmid, k_params)
    x = jax.random.normal(k_x, (N, Cin, H, W), jnp.float32)     # PyTorch NCHW input

    kparams = prepare_params(torch_params)
    fwd = jax.jit(channel_embed_forward)
    out = jax.block_until_ready(fwd(x, kparams))

    ref = reference(x, torch_params)
    assert out.shape == (N, Cout, H, W), out.shape
    max_err = float(jnp.max(jnp.abs(out - ref)))
    # bf16 MXU inputs (f32 accumulation) in both kernel and reference; residual difference is
    # accumulation order plus f32 rounding of the folded BN constants.
    assert max_err < 1e-2, f"mismatch vs reference: {max_err}"

    print("KERNEL_OK")
</pallas_src>

<mosaic_0001>
module attributes {stable_mosaic.version = 11 : i64} {
  func.func @_channel_embed_kernel(%arg0: i32, %arg1: memref<2x4x256xf32, #tpu.memory_space<vmem>>, %arg2: memref<16x4xbf16, #tpu.memory_space<vmem>>, %arg3: memref<8x8xbf16, #tpu.memory_space<vmem>>, %arg4: memref<8x11xf32, #tpu.memory_space<vmem>>, %arg5: memref<8x3xf32, #tpu.memory_space<vmem>>, %arg6: memref<2x8x256xf32, #tpu.memory_space<vmem>>) attributes {dimension_semantics = [#tpu.dimension_semantics<parallel>], iteration_bounds = array<i64: 1>, scalar_prefetch = 0 : i64, scratch_operands = 0 : i64, tpu.core_type = #tpu.core_type<tc>, window_params = [{transform_indices = @transform_0, window_bounds = array<i64: 2, 4, 256>}, {pipeline_mode = #tpu.pipeline_mode<synchronous>, transform_indices = @transform_1, window_bounds = array<i64: 16, 4>}, {pipeline_mode = #tpu.pipeline_mode<synchronous>, transform_indices = @transform_2, window_bounds = array<i64: 8, 8>}, {pipeline_mode = #tpu.pipeline_mode<synchronous>, transform_indices = @transform_3, window_bounds = array<i64: 8, 11>}, {pipeline_mode = #tpu.pipeline_mode<synchronous>, transform_indices = @transform_4, window_bounds = array<i64: 8, 3>}, {transform_indices = @transform_5, window_bounds = array<i64: 2, 8, 256>}]} {
    %c0 = arith.constant 0 : index
    %c0_0 = arith.constant 0 : index
    %0 = vector.load %arg2[%c0, %c0_0] : memref<16x4xbf16, #tpu.memory_space<vmem>>, vector<16x4xbf16>
    %c0_1 = arith.constant 0 : index
    %c0_2 = arith.constant 0 : index
    %1 = vector.load %arg3[%c0_1, %c0_2] : memref<8x8xbf16, #tpu.memory_space<vmem>>, vector<8x8xbf16>
    %c0_3 = arith.constant 0 : index
    %c0_4 = arith.constant 0 : index
    %2 = vector.load %arg4[%c0_3, %c0_4] : memref<8x11xf32, #tpu.memory_space<vmem>>, vector<8x11xf32>
    %c0_5 = arith.constant 0 : index
    %c0_6 = arith.constant 0 : index
    %3 = vector.load %arg5[%c0_5, %c0_6] : memref<8x3xf32, #tpu.memory_space<vmem>>, vector<8x3xf32>
    %4 = vector.extract_strided_slice %2 {offsets = [0, 0], sizes = [8, 1], strides = [1, 1]} : vector<8x11xf32> to vector<8x1xf32>
    %5 = vector.extract_strided_slice %2 {offsets = [0, 1], sizes = [8, 1], strides = [1, 1]} : vector<8x11xf32> to vector<8x1xf32>
    %6 = vector.extract_strided_slice %2 {offsets = [0, 2], sizes = [8, 1], strides = [1, 1]} : vector<8x11xf32> to vector<8x1xf32>
    %7 = vector.extract_strided_slice %2 {offsets = [0, 3], sizes = [8, 1], strides = [1, 1]} : vector<8x11xf32> to vector<8x1xf32>
    %8 = vector.extract_strided_slice %2 {offsets = [0, 4], sizes = [8, 1], strides = [1, 1]} : vector<8x11xf32> to vector<8x1xf32>
    %9 = vector.extract_strided_slice %2 {offsets = [0, 5], sizes = [8, 1], strides = [1, 1]} : vector<8x11xf32> to vector<8x1xf32>
    %10 = vector.extract_strided_slice %2 {offsets = [0, 6], sizes = [8, 1], strides = [1, 1]} : vector<8x11xf32> to vector<8x1xf32>
    %11 = vector.extract_strided_slice %2 {offsets = [0, 7], sizes = [8, 1], strides = [1, 1]} : vector<8x11xf32> to vector<8x1xf32>
    %12 = vector.extract_strided_slice %2 {offsets = [0, 8], sizes = [8, 1], strides = [1, 1]} : vector<8x11xf32> to vector<8x1xf32>
    %13 = vector.extract_strided_slice %2 {offsets = [0, 9], sizes = [8, 1], strides = [1, 1]} : vector<8x11xf32> to vector<8x1xf32>
    %14 = vector.extract_strided_slice %2 {offsets = [0, 10], sizes = [8, 1], strides = [1, 1]} : vector<8x11xf32> to vector<8x1xf32>
    %15 = vector.extract_strided_slice %3 {offsets = [0, 0], sizes = [8, 1], strides = [1, 1]} : vector<8x3xf32> to vector<8x1xf32>
    %16 = vector.extract_strided_slice %3 {offsets = [0, 1], sizes = [8, 1], strides = [1, 1]} : vector<8x3xf32> to vector<8x1xf32>
    %17 = vector.extract_strided_slice %3 {offsets = [0, 2], sizes = [8, 1], strides = [1, 1]} : vector<8x3xf32> to vector<8x1xf32>
    %18 = tpu.iota {dimensions = array<i32: 1>} : vector<1x256xi32>
    %c15_i32 = arith.constant 15 : i32
    %19 = vector.broadcast %c15_i32 : i32 to vector<1x256xi32>
    %20 = arith.andi %18, %19 : vector<1x256xi32>
    %c16_i32 = arith.constant 16 : i32
    %21 = vector.broadcast %c16_i32 : i32 to vector<1x256xi32>
    %22 = arith.cmpi sge, %18, %21 : vector<1x256xi32>
    %c240_i32 = arith.constant 240 : i32
    %23 = vector.broadcast %c240_i32 : i32 to vector<1x256xi32>
    %24 = arith.cmpi slt, %18, %23 : vector<1x256xi32>
    %c1_i32 = arith.constant 1 : i32
    %25 = vector.broadcast %c1_i32 : i32 to vector<1x256xi32>
    %26 = arith.cmpi sge, %20, %25 : vector<1x256xi32>
    %c14_i32 = arith.constant 14 : i32
    %27 = vector.broadcast %c14_i32 : i32 to vector<1x256xi32>
    %28 = arith.cmpi sle, %20, %27 : vector<1x256xi32>
    %29 = arith.andi %22, %26 : vector<1x256xi1>
    %30 = arith.andi %22, %28 : vector<1x256xi1>
    %31 = arith.andi %24, %26 : vector<1x256xi1>
    %32 = arith.andi %24, %28 : vector<1x256xi1>
    %c0_7 = arith.constant 0 : index
    %c0_8 = arith.constant 0 : index
    %c0_9 = arith.constant 0 : index
    %33 = vector.load %arg1[%c0_7, %c0_8, %c0_9] : memref<2x4x256xf32, #tpu.memory_space<vmem>>, vector<1x4x256xf32>
    %34 = vector.shape_cast %33 : vector<1x4x256xf32> to vector<4x256xf32>
    %35 = arith.truncf %34 : vector<4x256xf32> to vector<4x256xbf16>
    %cst = arith.constant dense<0.000000e+00> : vector<16x256xf32>
    %36 = tpu.matmul %0, %35, %cst {dimension_numbers = #tpu.dot_dimension_numbers<[1], [0], [0], [1], [0, 0, 1, 1], [], []>} : vector<16x4xbf16>, vector<4x256xbf16>, vector<16x256xf32> -> vector<16x256xf32>
    %37 = vector.extract_strided_slice %36 {offsets = [0, 0], sizes = [8, 256], strides = [1, 1]} : vector<16x256xf32> to vector<8x256xf32>
    %38 = vector.extract_strided_slice %36 {offsets = [8, 0], sizes = [8, 256], strides = [1, 1]} : vector<16x256xf32> to vector<8x256xf32>
    %39 = vector.broadcast %13 : vector<8x1xf32> to vector<8x256xf32>
    %40 = arith.addf %38, %39 : vector<8x256xf32>
    %c17_i32 = arith.constant 17 : i32
    %41 = tpu.dynamic_rotate %40 by %c17_i32 dim 1 : vector<8x256xf32>, i32 -> vector<8x256xf32>
    %cst_10 = arith.constant 0.000000e+00 : f32
    %42 = vector.shape_cast %29 : vector<1x256xi1> to vector<1x256xi1>
    %43 = vector.broadcast %42 : vector<1x256xi1> to vector<8x256xi1>
    %44 = vector.broadcast %cst_10 : f32 to vector<8x256xf32>
    %45 = arith.select %43, %41, %44 : vector<8x256xi1>, vector<8x256xf32>
    %46 = vector.broadcast %4 : vector<8x1xf32> to vector<8x256xf32>
    %47 = arith.mulf %45, %46 : vector<8x256xf32>
    %c16_i32_11 = arith.constant 16 : i32
    %48 = tpu.dynamic_rotate %40 by %c16_i32_11 dim 1 : vector<8x256xf32>, i32 -> vector<8x256xf32>
    %cst_12 = arith.constant 0.000000e+00 : f32
    %49 = vector.shape_cast %22 : vector<1x256xi1> to vector<1x256xi1>
    %50 = vector.broadcast %49 : vector<1x256xi1> to vector<8x256xi1>
    %51 = vector.broadcast %cst_12 : f32 to vector<8x256xf32>
    %52 = arith.select %50, %48, %51 : vector<8x256xi1>, vector<8x256xf32>
    %53 = vector.broadcast %5 : vector<8x1xf32> to vector<8x256xf32>
    %54 = arith.mulf %52, %53 : vector<8x256xf32>
    %55 = arith.addf %47, %54 : vector<8x256xf32>
    %c15_i32_13 = arith.constant 15 : i32
    %56 = tpu.dynamic_rotate %40 by %c15_i32_13 dim 1 : vector<8x256xf32>, i32 -> vector<8x256xf32>
    %cst_14 = arith.constant 0.000000e+00 : f32
    %57 = vector.shape_cast %30 : vector<1x256xi1> to vector<1x256xi1>
    %58 = vector.broadcast %57 : vector<1x256xi1> to vector<8x256xi1>
    %59 = vector.broadcast %cst_14 : f32 to vector<8x256xf32>
    %60 = arith.select %58, %56, %59 : vector<8x256xi1>, vector<8x256xf32>
    %61 = vector.broadcast %6 : vector<8x1xf32> to vector<8x256xf32>
    %62 = arith.mulf %60, %61 : vector<8x256xf32>
    %63 = arith.addf %55, %62 : vector<8x256xf32>
    %c1_i32_15 = arith.constant 1 : i32
    %64 = tpu.dynamic_rotate %40 by %c1_i32_15 dim 1 : vector<8x256xf32>, i32 -> vector<8x256xf32>
    %cst_16 = arith.constant 0.000000e+00 : f32
    %65 = vector.shape_cast %26 : vector<1x256xi1> to vector<1x256xi1>
    %66 = vector.broadcast %65 : vector<1x256xi1> to vector<8x256xi1>
    %67 = vector.broadcast %cst_16 : f32 to vector<8x256xf32>
    %68 = arith.select %66, %64, %67 : vector<8x256xi1>, vector<8x256xf32>
    %69 = vector.broadcast %7 : vector<8x1xf32> to vector<8x256xf32>
    %70 = arith.mulf %68, %69 : vector<8x256xf32>
    %71 = arith.addf %63, %70 : vector<8x256xf32>
    %72 = vector.broadcast %8 : vector<8x1xf32> to vector<8x256xf32>
    %73 = arith.mulf %40, %72 : vector<8x256xf32>
    %74 = arith.addf %71, %73 : vector<8x256xf32>
    %c255_i32 = arith.constant 255 : i32
    %75 = tpu.dynamic_rotate %40 by %c255_i32 dim 1 : vector<8x256xf32>, i32 -> vector<8x256xf32>
    %cst_17 = arith.constant 0.000000e+00 : f32
    %76 = vector.shape_cast %28 : vector<1x256xi1> to vector<1x256xi1>
    %77 = vector.broadcast %76 : vector<1x256xi1> to vector<8x256xi1>
    %78 = vector.broadcast %cst_17 : f32 to vector<8x256xf32>
    %79 = arith.select %77, %75, %78 : vector<8x256xi1>, vector<8x256xf32>
    %80 = vector.broadcast %9 : vector<8x1xf32> to vector<8x256xf32>
    %81 = arith.mulf %79, %80 : vector<8x256xf32>
    %82 = arith.addf %74, %81 : vector<8x256xf32>
    %c241_i32 = arith.constant 241 : i32
    %83 = tpu.dynamic_rotate %40 by %c241_i32 dim 1 : vector<8x256xf32>, i32 -> vector<8x256xf32>
    %cst_18 = arith.constant 0.000000e+00 : f32
    %84 = vector.shape_cast %31 : vector<1x256xi1> to vector<1x256xi1>
    %85 = vector.broadcast %84 : vector<1x256xi1> to vector<8x256xi1>
    %86 = vector.broadcast %cst_18 : f32 to vector<8x256xf32>
    %87 = arith.select %85, %83, %86 : vector<8x256xi1>, vector<8x256xf32>
    %88 = vector.broadcast %10 : vector<8x1xf32> to vector<8x256xf32>
    %89 = arith.mulf %87, %88 : vector<8x256xf32>
    %90 = arith.addf %82, %89 : vector<8x256xf32>
    %c240_i32_19 = arith.constant 240 : i32
    %91 = tpu.dynamic_rotate %40 by %c240_i32_19 dim 1 : vector<8x256xf32>, i32 -> vector<8x256xf32>
    %cst_20 = arith.constant 0.000000e+00 : f32
    %92 = vector.shape_cast %24 : vector<1x256xi1> to vector<1x256xi1>
    %93 = vector.broadcast %92 : vector<1x256xi1> to vector<8x256xi1>
    %94 = vector.broadcast %cst_20 : f32 to vector<8x256xf32>
    %95 = arith.select %93, %91, %94 : vector<8x256xi1>, vector<8x256xf32>
    %96 = vector.broadcast %11 : vector<8x1xf32> to vector<8x256xf32>
    %97 = arith.mulf %95, %96 : vector<8x256xf32>
    %98 = arith.addf %90, %97 : vector<8x256xf32>
    %c239_i32 = arith.constant 239 : i32
    %99 = tpu.dynamic_rotate %40 by %c239_i32 dim 1 : vector<8x256xf32>, i32 -> vector<8x256xf32>
    %cst_21 = arith.constant 0.000000e+00 : f32
    %100 = vector.shape_cast %32 : vector<1x256xi1> to vector<1x256xi1>
    %101 = vector.broadcast %100 : vector<1x256xi1> to vector<8x256xi1>
    %102 = vector.broadcast %cst_21 : f32 to vector<8x256xf32>
    %103 = arith.select %101, %99, %102 : vector<8x256xi1>, vector<8x256xf32>
    %104 = vector.broadcast %12 : vector<8x1xf32> to vector<8x256xf32>
    %105 = arith.mulf %103, %104 : vector<8x256xf32>
    %106 = arith.addf %98, %105 : vector<8x256xf32>
    %107 = vector.broadcast %14 : vector<8x1xf32> to vector<8x256xf32>
    %108 = arith.addf %106, %107 : vector<8x256xf32>
    %cst_22 = arith.constant 0.000000e+00 : f32
    %109 = vector.broadcast %cst_22 : f32 to vector<8x256xf32>
    %110 = arith.maximumf %108, %109 : vector<8x256xf32>
    %111 = arith.truncf %110 : vector<8x256xf32> to vector<8x256xbf16>
    %cst_23 = arith.constant dense<0.000000e+00> : vector<8x256xf32>
    %112 = tpu.matmul %1, %111, %cst_23 {dimension_numbers = #tpu.dot_dimension_numbers<[1], [0], [0], [1], [0, 0, 1, 1], [], []>} : vector<8x8xbf16>, vector<8x256xbf16>, vector<8x256xf32> -> vector<8x256xf32>
    %113 = vector.broadcast %15 : vector<8x1xf32> to vector<8x256xf32>
    %114 = arith.mulf %37, %113 : vector<8x256xf32>
    %115 = vector.broadcast %16 : vector<8x1xf32> to vector<8x256xf32>
    %116 = arith.mulf %112, %115 : vector<8x256xf32>
    %117 = arith.addf %114, %116 : vector<8x256xf32>
    %118 = vector.broadcast %17 : vector<8x1xf32> to vector<8x256xf32>
    %119 = arith.addf %117, %118 : vector<8x256xf32>
    %c0_24 = arith.constant 0 : index
    %c0_25 = arith.constant 0 : index
    %c0_26 = arith.constant 0 : index
    %120 = vector.load %arg6[%c0_24, %c0_25, %c0_26] : memref<2x8x256xf32, #tpu.memory_space<vmem>>, vector<1x8x256xf32>
    %121 = vector.shape_cast %120 : vector<1x8x256xf32> to vector<8x256xf32>
    %122 = vector.shape_cast %119 : vector<8x256xf32> to vector<1x8x256xf32>
    tpu.vector_store %arg6[%c0_24, %c0_25, %c0_26], %122 {strides = array<i32>} : memref<2x8x256xf32, #tpu.memory_space<vmem>>, vector<1x8x256xf32>,
    %c1 = arith.constant 1 : index
    %c0_27 = arith.constant 0 : index
    %c0_28 = arith.constant 0 : index
    %123 = vector.load %arg1[%c1, %c0_27, %c0_28] : memref<2x4x256xf32, #tpu.memory_space<vmem>>, vector<1x4x256xf32>
    %124 = vector.shape_cast %123 : vector<1x4x256xf32> to vector<4x256xf32>
    %125 = arith.truncf %124 : vector<4x256xf32> to vector<4x256xbf16>
    %cst_29 = arith.constant dense<0.000000e+00> : vector<16x256xf32>
    %126 = tpu.matmul %0, %125, %cst_29 {dimension_numbers = #tpu.dot_dimension_numbers<[1], [0], [0], [1], [0, 0, 1, 1], [], []>} : vector<16x4xbf16>, vector<4x256xbf16>, vector<16x256xf32> -> vector<16x256xf32>
    %127 = vector.extract_strided_slice %126 {offsets = [0, 0], sizes = [8, 256], strides = [1, 1]} : vector<16x256xf32> to vector<8x256xf32>
    %128 = vector.extract_strided_slice %126 {offsets = [8, 0], sizes = [8, 256], strides = [1, 1]} : vector<16x256xf32> to vector<8x256xf32>
    %129 = vector.broadcast %13 : vector<8x1xf32> to vector<8x256xf32>
    %130 = arith.addf %128, %129 : vector<8x256xf32>
    %c17_i32_30 = arith.constant 17 : i32
    %131 = tpu.dynamic_rotate %130 by %c17_i32_30 dim 1 : vector<8x256xf32>, i32 -> vector<8x256xf32>
    %cst_31 = arith.constant 0.000000e+00 : f32
    %132 = vector.shape_cast %29 : vector<1x256xi1> to vector<1x256xi1>
    %133 = vector.broadcast %132 : vector<1x256xi1> to vector<8x256xi1>
    %134 = vector.broadcast %cst_31 : f32 to vector<8x256xf32>
    %135 = arith.select %133, %131, %134 : vector<8x256xi1>, vector<8x256xf32>
    %136 = vector.broadcast %4 : vector<8x1xf32> to vector<8x256xf32>
    %137 = arith.mulf %135, %136 : vector<8x256xf32>
    %c16_i32_32 = arith.constant 16 : i32
    %138 = tpu.dynamic_rotate %130 by %c16_i32_32 dim 1 : vector<8x256xf32>, i32 -> vector<8x256xf32>
    %cst_33 = arith.constant 0.000000e+00 : f32
    %139 = vector.shape_cast %22 : vector<1x256xi1> to vector<1x256xi1>
    %140 = vector.broadcast %139 : vector<1x256xi1> to vector<8x256xi1>
    %141 = vector.broadcast %cst_33 : f32 to vector<8x256xf32>
    %142 = arith.select %140, %138, %141 : vector<8x256xi1>, vector<8x256xf32>
    %143 = vector.broadcast %5 : vector<8x1xf32> to vector<8x256xf32>
    %144 = arith.mulf %142, %143 : vector<8x256xf32>
    %145 = arith.addf %137, %144 : vector<8x256xf32>
    %c15_i32_34 = arith.constant 15 : i32
    %146 = tpu.dynamic_rotate %130 by %c15_i32_34 dim 1 : vector<8x256xf32>, i32 -> vector<8x256xf32>
    %cst_35 = arith.constant 0.000000e+00 : f32
    %147 = vector.shape_cast %30 : vector<1x256xi1> to vector<1x256xi1>
    %148 = vector.broadcast %147 : vector<1x256xi1> to vector<8x256xi1>
    %149 = vector.broadcast %cst_35 : f32 to vector<8x256xf32>
    %150 = arith.select %148, %146, %149 : vector<8x256xi1>, vector<8x256xf32>
    %151 = vector.broadcast %6 : vector<8x1xf32> to vector<8x256xf32>
    %152 = arith.mulf %150, %151 : vector<8x256xf32>
    %153 = arith.addf %145, %152 : vector<8x256xf32>
    %c1_i32_36 = arith.constant 1 : i32
    %154 = tpu.dynamic_rotate %130 by %c1_i32_36 dim 1 : vector<8x256xf32>, i32 -> vector<8x256xf32>
    %cst_37 = arith.constant 0.000000e+00 : f32
    %155 = vector.shape_cast %26 : vector<1x256xi1> to vector<1x256xi1>
    %156 = vector.broadcast %155 : vector<1x256xi1> to vector<8x256xi1>
    %157 = vector.broadcast %cst_37 : f32 to vector<8x256xf32>
    %158 = arith.select %156, %154, %157 : vector<8x256xi1>, vector<8x256xf32>
    %159 = vector.broadcast %7 : vector<8x1xf32> to vector<8x256xf32>
    %160 = arith.mulf %158, %159 : vector<8x256xf32>
    %161 = arith.addf %153, %160 : vector<8x256xf32>
    %162 = vector.broadcast %8 : vector<8x1xf32> to vector<8x256xf32>
    %163 = arith.mulf %130, %162 : vector<8x256xf32>
    %164 = arith.addf %161, %163 : vector<8x256xf32>
    %c255_i32_38 = arith.constant 255 : i32
    %165 = tpu.dynamic_rotate %130 by %c255_i32_38 dim 1 : vector<8x256xf32>, i32 -> vector<8x256xf32>
    %cst_39 = arith.constant 0.000000e+00 : f32
    %166 = vector.shape_cast %28 : vector<1x256xi1> to vector<1x256xi1>
    %167 = vector.broadcast %166 : vector<1x256xi1> to vector<8x256xi1>
    %168 = vector.broadcast %cst_39 : f32 to vector<8x256xf32>
    %169 = arith.select %167, %165, %168 : vector<8x256xi1>, vector<8x256xf32>
    %170 = vector.broadcast %9 : vector<8x1xf32> to vector<8x256xf32>
    %171 = arith.mulf %169, %170 : vector<8x256xf32>
    %172 = arith.addf %164, %171 : vector<8x256xf32>
    %c241_i32_40 = arith.constant 241 : i32
    %173 = tpu.dynamic_rotate %130 by %c241_i32_40 dim 1 : vector<8x256xf32>, i32 -> vector<8x256xf32>
    %cst_41 = arith.constant 0.000000e+00 : f32
    %174 = vector.shape_cast %31 : vector<1x256xi1> to vector<1x256xi1>
    %175 = vector.broadcast %174 : vector<1x256xi1> to vector<8x256xi1>
    %176 = vector.broadcast %cst_41 : f32 to vector<8x256xf32>
    %177 = arith.select %175, %173, %176 : vector<8x256xi1>, vector<8x256xf32>
    %178 = vector.broadcast %10 : vector<8x1xf32> to vector<8x256xf32>
    %179 = arith.mulf %177, %178 : vector<8x256xf32>
    %180 = arith.addf %172, %179 : vector<8x256xf32>
    %c240_i32_42 = arith.constant 240 : i32
    %181 = tpu.dynamic_rotate %130 by %c240_i32_42 dim 1 : vector<8x256xf32>, i32 -> vector<8x256xf32>
    %cst_43 = arith.constant 0.000000e+00 : f32
    %182 = vector.shape_cast %24 : vector<1x256xi1> to vector<1x256xi1>
    %183 = vector.broadcast %182 : vector<1x256xi1> to vector<8x256xi1>
    %184 = vector.broadcast %cst_43 : f32 to vector<8x256xf32>
    %185 = arith.select %183, %181, %184 : vector<8x256xi1>, vector<8x256xf32>
    %186 = vector.broadcast %11 : vector<8x1xf32> to vector<8x256xf32>
    %187 = arith.mulf %185, %186 : vector<8x256xf32>
    %188 = arith.addf %180, %187 : vector<8x256xf32>
    %c239_i32_44 = arith.constant 239 : i32
    %189 = tpu.dynamic_rotate %130 by %c239_i32_44 dim 1 : vector<8x256xf32>, i32 -> vector<8x256xf32>
    %cst_45 = arith.constant 0.000000e+00 : f32
    %190 = vector.shape_cast %32 : vector<1x256xi1> to vector<1x256xi1>
    %191 = vector.broadcast %190 : vector<1x256xi1> to vector<8x256xi1>
    %192 = vector.broadcast %cst_45 : f32 to vector<8x256xf32>
    %193 = arith.select %191, %189, %192 : vector<8x256xi1>, vector<8x256xf32>
    %194 = vector.broadcast %12 : vector<8x1xf32> to vector<8x256xf32>
    %195 = arith.mulf %193, %194 : vector<8x256xf32>
    %196 = arith.addf %188, %195 : vector<8x256xf32>
    %197 = vector.broadcast %14 : vector<8x1xf32> to vector<8x256xf32>
    %198 = arith.addf %196, %197 : vector<8x256xf32>
    %cst_46 = arith.constant 0.000000e+00 : f32
    %199 = vector.broadcast %cst_46 : f32 to vector<8x256xf32>
    %200 = arith.maximumf %198, %199 : vector<8x256xf32>
    %201 = arith.truncf %200 : vector<8x256xf32> to vector<8x256xbf16>
    %cst_47 = arith.constant dense<0.000000e+00> : vector<8x256xf32>
    %202 = tpu.matmul %1, %201, %cst_47 {dimension_numbers = #tpu.dot_dimension_numbers<[1], [0], [0], [1], [0, 0, 1, 1], [], []>} : vector<8x8xbf16>, vector<8x256xbf16>, vector<8x256xf32> -> vector<8x256xf32>
    %203 = vector.broadcast %15 : vector<8x1xf32> to vector<8x256xf32>
    %204 = arith.mulf %127, %203 : vector<8x256xf32>
    %205 = vector.broadcast %16 : vector<8x1xf32> to vector<8x256xf32>
    %206 = arith.mulf %202, %205 : vector<8x256xf32>
    %207 = arith.addf %204, %206 : vector<8x256xf32>
    %208 = vector.broadcast %17 : vector<8x1xf32> to vector<8x256xf32>
    %209 = arith.addf %207, %208 : vector<8x256xf32>
    %c1_48 = arith.constant 1 : index
    %c0_49 = arith.constant 0 : index
    %c0_50 = arith.constant 0 : index
    %210 = vector.load %arg6[%c1_48, %c0_49, %c0_50] : memref<2x8x256xf32, #tpu.memory_space<vmem>>, vector<1x8x256xf32>
    %211 = vector.shape_cast %210 : vector<1x8x256xf32> to vector<8x256xf32>
    %212 = vector.shape_cast %209 : vector<8x256xf32> to vector<1x8x256xf32>
    tpu.vector_store %arg6[%c1_48, %c0_49, %c0_50], %212 {strides = array<i32>} : memref<2x8x256xf32, #tpu.memory_space<vmem>>, vector<1x8x256xf32>,
    return
  }
  func.func @transform_0(%arg0: i32) -> (i32, i32, i32) {
    %c0_i32 = arith.constant 0 : i32
    %c0_i32_0 = arith.constant 0 : i32
    %c0_i32_1 = arith.constant 0 : i32
    return %arg0, %c0_i32, %c0_i32_0 : i32, i32, i32
  }
  func.func @transform_1(%arg0: i32) -> (i32, i32) {
    %c0_i32 = arith.constant 0 : i32
    %c0_i32_0 = arith.constant 0 : i32
    %c0_i32_1 = arith.constant 0 : i32
    return %c0_i32, %c0_i32_0 : i32, i32
  }
  func.func @transform_2(%arg0: i32) -> (i32, i32) {
    %c0_i32 = arith.constant 0 : i32
    %c0_i32_0 = arith.constant 0 : i32
    %c0_i32_1 = arith.constant 0 : i32
    return %c0_i32, %c0_i32_0 : i32, i32
  }
  func.func @transform_3(%arg0: i32) -> (i32, i32) {
    %c0_i32 = arith.constant 0 : i32
    %c0_i32_0 = arith.constant 0 : i32
    %c0_i32_1 = arith.constant 0 : i32
    return %c0_i32, %c0_i32_0 : i32, i32
  }
  func.func @transform_4(%arg0: i32) -> (i32, i32) {
    %c0_i32 = arith.constant 0 : i32
    %c0_i32_0 = arith.constant 0 : i32
    %c0_i32_1 = arith.constant 0 : i32
    return %c0_i32, %c0_i32_0 : i32, i32
  }
  func.func @transform_5(%arg0: i32) -> (i32, i32, i32) {
    %c0_i32 = arith.constant 0 : i32
    %c0_i32_0 = arith.constant 0 : i32
    %c0_i32_1 = arith.constant 0 : i32
    return %arg0, %c0_i32, %c0_i32_0 : i32, i32, i32
  }
}

</mosaic_0001>

<llo_original>
// kernel: channel_embed_forward.1
$region0: #{channel_embed_forward.1}
  #allocation0 [shape = 'u32[]', space=smem, size = 0x4, offset = 0x4, fixed_abs, tag = 'smem constant byte address 0x4 - core index']
  #allocation1 [shape = 'u32[72,128]{1,0:T(1,128)}', space=vmem, size = 0x9000, scoped, tag = 'internal scratch']
  %s0 = inlined_call_operand.vmem [shape: f32[2,4,256], index: 0, kind: input, shape index: {}]
  %s1 = inlined_call_operand.vmem [shape: bf16[16,4], index: 1, kind: input, shape index: {}]
  %s2 = inlined_call_operand.vmem [shape: bf16[8,8], index: 2, kind: input, shape index: {}]
  %s3 = inlined_call_operand.vmem [shape: f32[8,11], index: 3, kind: input, shape index: {}]
  %s4 = inlined_call_operand.vmem [shape: f32[8,3], index: 4, kind: input, shape index: {}]
  %s5 = inlined_call_operand.vmem [shape: f32[2,8,256], index: 5, kind: output, shape index: {}]
  %s6 = sld [smem:[#allocation0]]
  $region30: #{channel_embed_forward.1} parent=0
    _
  %s8 = ssub.s32 1, %s6
  %s9 = scalar_select 0, %s8, %s6
  // Predicated region
  $region2: #{channel_embed_forward.1} parent=0 // pred_check
    _
  $region3: #{channel_embed_forward.1} parent=0 // pred_check_branch
    %11 = sbr.rel (0) target = $region5
  $region4: #{channel_embed_forward.1} parent=0 // pred_region
    _
  $region5: #{channel_embed_forward.1} parent=0 // pred_fallthru
    _
  // Predicated region
  $region6: #{channel_embed_forward.1} parent=0 // pred_check
    _
  $region7: #{channel_embed_forward.1} parent=0 // pred_check_branch
    %13 = sbr.rel (0) target = $region9
  $region8: #{channel_embed_forward.1} parent=0 // pred_region
    _
  $region9: #{channel_embed_forward.1} parent=0 // pred_fallthru
    _
  // Predicated region
  $region10: #{channel_embed_forward.1} parent=0 // pred_check
    _
  $region11: #{channel_embed_forward.1} parent=0 // pred_check_branch
    %15 = sbr.rel (0) target = $region13
  $region12: #{channel_embed_forward.1} parent=0 // pred_region
    _
  $region13: #{channel_embed_forward.1} parent=0 // pred_fallthru
    _
  // Predicated region
  $region14: #{channel_embed_forward.1} parent=0 // pred_check
    _
  $region15: #{channel_embed_forward.1} parent=0 // pred_check_branch
    %17 = sbr.rel (0) target = $region17
  $region16: #{channel_embed_forward.1} parent=0 // pred_region
    _
  $region17: #{channel_embed_forward.1} parent=0 // pred_fallthru
    _
  // Predicated region
  $region18: #{channel_embed_forward.1} parent=0 // pred_check
    _
  $region19: #{channel_embed_forward.1} parent=0 // pred_check_branch
    %19 = sbr.rel (0) target = $region21
  $region20: #{channel_embed_forward.1} parent=0 // pred_region
    _
  $region21: #{channel_embed_forward.1} parent=0 // pred_fallthru
    _
  %v21 = vld [vmem:[%s1] sm:$0xf]
  %v22 = vld [vmem:[%s1 + $0x4] sm:$0xf]
  %v23 = vld [vmem:[%s2] sm:$0xf]
  %v24 = vld [vmem:[%s3] sm:$0xff]
  %v25 = vld [vmem:[%s4] sm:$0xff]
  %v26 = vlaneseq
  %v27 = vand.u32 %v26, 127
  %v28 = vadd.s32 %v27, 128
  %v29 = vand.u32 %v27, 15
  %v30 = vand.u32 %v28, 15
  %vm31 = vcmp.ge.s32.totalorder %v27, 16
  %vm32 = vcmp.ge.s32.totalorder %v28, 16
  %vm33 = vcmp.lt.s32.totalorder %v27, 240
  %vm34 = vcmp.lt.s32.totalorder %v28, 240
  %vm35 = vcmp.ge.s32.totalorder %v29, 1
  %vm36 = vcmp.ge.s32.totalorder %v30, 1
  %vm37 = vcmp.le.s32.totalorder %v29, 14
  %vm38 = vcmp.le.s32.totalorder %v30, 14
  %vm39 = vmand %vm31, %vm35
  %vm40 = vmand %vm32, %vm36
  %vm41 = vmand %vm31, %vm37
  %vm42 = vmand %vm32, %vm38
  %vm43 = vmand %vm33, %vm35
  %vm44 = vmand %vm34, %vm36
  %vm45 = vmand %vm33, %vm37
  %vm46 = vmand %vm34, %vm38
  %v47 = vld [vmem:[%s0] sm:$0xff]
  %49 = vst [vmem:[#allocation1] ss:$2 sm:$0xff] %v47
  %v50 = vld.sshfl [vmem:[#allocation1] sm:$0xff pattern:$0x75316420]
  %v51 = vld.sshfl [vmem:[#allocation1 + $0x8] sm:$0xff pattern:$0x75316420]
  %v54 = vpack.c.bf16 %v50, %v50
  %v55 = vpack.c.bf16 %v51, %v51
  %v58 = vunpack.c.l.b16 %v21
  %v59 = vunpack.c.l.b16 %v22
  %v60 = vpack.c.b16 %v59, %v58
  %vm61 = vcmask 31744
  %v63 = vsel %vm61, %v60, 0
  %vm65 = vcmask 1041408
  %v67 = vsel %vm65, %v54, 0
  %v70 = vsel %vm65, %v55, 0
  %72 = vmatpush.bf16.msra.mxu0 0
  %73 = vmatpush.bf16.msra.mxu0 0
  %74 = vmatpush.bf16.msra.mxu0 0
  %75 = vmatpush.bf16.msra.mxu0 0
  %76 = vmatpush.bf16.msra.mxu0 0
  %77 = vmatpush.bf16.msra.mxu0 0
  %78 = vmatpush.bf16.msra.mxu0 0
  %79 = vmatpush.bf16.msra.mxu0 %v67
  %80 = vmatmul.bf16.gmra.mxu0 %v63
  %v81 = vpop.f32.mrf.mxu0
  %v82 = vadd.f32 0.0, %v81
  %v83 = vpop.f32.mrf.mxu0
  %v84 = vadd.f32 0.0, %v83
  %85 = vdwg.mxu0
  %86 = vmatpush.bf16.msra.mxu0 0
  %87 = vmatpush.bf16.msra.mxu0 0
  %88 = vmatpush.bf16.msra.mxu0 0
  %89 = vmatpush.bf16.msra.mxu0 0
  %90 = vmatpush.bf16.msra.mxu0 0
  %91 = vmatpush.bf16.msra.mxu0 0
  %92 = vmatpush.bf16.msra.mxu0 0
  %93 = vmatpush.bf16.msra.mxu0 %v70
  %94 = vmatmul.bf16.gmra.mxu0 %v63
  %v95 = vpop.f32.mrf.mxu0
  %v96 = vadd.f32 0.0, %v95
  %v97 = vpop.f32.mrf.mxu0
  %v98 = vadd.f32 0.0, %v97
  %99 = vdwg.mxu0
  %101 = vset.pattern.permute.xlu0 9
  %102 = vperm.xlu0 %101, %v24
  %v103 = vpop.permute.xlu0 %102
  %v105 = vadd.f32 %v84, %v103
  %v106 = vadd.f32 %v98, %v103
  %107 = vrot.lane.b32.xlu0 %v105, 17
  %v108 = vpop.permute.xlu0 %107
  %109 = vrot.lane.b32.xlu0 %v106, 17
  %v110 = vpop.permute.xlu0 %109
  %vm111 = vcmp.lt.s32.totalorder %v27, 17
  %v112 = vsel %vm111, %v108, %v110
  %v113 = vsel %vm111, %v110, %v108
  %v114 = vsel %vm39, 1, 0
  %v115 = vsel %vm40, 1, 0
  %vm116 = vcmp.eq.s32.totalorder %v114, 1
  %vm117 = vcmp.eq.s32.totalorder %v115, 1
  %v118 = vsel %vm116, %v113, 0.0
  %v119 = vsel %vm117, %v112, 0.0
  %120 = vset.pattern.permute.xlu0 0
  %121 = vperm.xlu0 %120, %v24
  %v122 = vpop.permute.xlu0 %121
  %v124 = vmul.f32 %v118, %v122
  %v125 = vmul.f32 %v119, %v122
  %126 = vrot.lane.b32.xlu0 %v105, 16
  %v127 = vpop.permute.xlu0 %126
  %128 = vrot.lane.b32.xlu0 %v106, 16
  %v129 = vpop.permute.xlu0 %128
  %vm130 = vcmp.lt.s32.totalorder %v27, 16
  %v131 = vsel %vm130, %v127, %v129
  %v132 = vsel %vm130, %v129, %v127
  %v133 = vsel %vm31, 1, 0
  %v134 = vsel %vm32, 1, 0
  %vm135 = vcmp.eq.s32.totalorder %v133, 1
  %vm136 = vcmp.eq.s32.totalorder %v134, 1
  %v137 = vsel %vm135, %v132, 0.0
  %v138 = vsel %vm136, %v131, 0.0
  %139 = vset.pattern.permute.xlu0 1
  %140 = vperm.xlu0 %139, %v24
  %v141 = vpop.permute.xlu0 %140
  %v143 = vmul.f32 %v137, %v141
  %v144 = vmul.f32 %v138, %v141
  %v145 = vadd.f32 %v124, %v143
  %v146 = vadd.f32 %v125, %v144
  %147 = vrot.lane.b32.xlu0 %v105, 15
  %v148 = vpop.permute.xlu0 %147
  %149 = vrot.lane.b32.xlu0 %v106, 15
  %v150 = vpop.permute.xlu0 %149
  %vm151 = vcmp.lt.s32.totalorder %v27, 15
  %v152 = vsel %vm151, %v148, %v150
  %v153 = vsel %vm151, %v150, %v148
  %v154 = vsel %vm41, 1, 0
  %v155 = vsel %vm42, 1, 0
  %vm156 = vcmp.eq.s32.totalorder %v154, 1
  %vm157 = vcmp.eq.s32.totalorder %v155, 1
  %v158 = vsel %vm156, %v153, 0.0
  %v159 = vsel %vm157, %v152, 0.0
  %160 = vset.pattern.permute.xlu0 2
  %161 = vperm.xlu0 %160, %v24
  %v162 = vpop.permute.xlu0 %161
  %v164 = vmul.f32 %v158, %v162
  %v165 = vmul.f32 %v159, %v162
  %v166 = vadd.f32 %v145, %v164
  %v167 = vadd.f32 %v146, %v165
  %168 = vrot.lane.b32.xlu0 %v105, 1
  %v169 = vpop.permute.xlu0 %168
  %170 = vrot.lane.b32.xlu0 %v106, 1
  %v171 = vpop.permute.xlu0 %170
  %vm172 = vcmp.lt.s32.totalorder %v27, 1
  %v173 = vsel %vm172, %v169, %v171
  %v174 = vsel %vm172, %v171, %v169
  %v175 = vsel %vm35, 1, 0
  %v176 = vsel %vm36, 1, 0
  %vm177 = vcmp.eq.s32.totalorder %v175, 1
  %vm178 = vcmp.eq.s32.totalorder %v176, 1
  %v179 = vsel %vm177, %v174, 0.0
  %v180 = vsel %vm178, %v173, 0.0
  %181 = vset.pattern.permute.xlu0 3
  %182 = vperm.xlu0 %181, %v24
  %v183 = vpop.permute.xlu0 %182
  %v185 = vmul.f32 %v179, %v183
  %v186 = vmul.f32 %v180, %v183
  %v187 = vadd.f32 %v166, %v185
  %v188 = vadd.f32 %v167, %v186
  %189 = vset.pattern.permute.xlu0 4
  %190 = vperm.xlu0 %189, %v24
  %v191 = vpop.permute.xlu0 %190
  %v193 = vmul.f32 %v105, %v191
  %v194 = vmul.f32 %v106, %v191
  %v195 = vadd.f32 %v187, %v193
  %v196 = vadd.f32 %v188, %v194
  %197 = vrot.lane.b32.xlu0 %v105, 127
  %v198 = vpop.permute.xlu0 %197
  %199 = vrot.lane.b32.xlu0 %v106, 127
  %v200 = vpop.permute.xlu0 %199
  %vm201 = vcmp.lt.s32.totalorder %v27, 127
  %v202 = vsel %vm201, %v198, %v200
  %v203 = vsel %vm201, %v200, %v198
  %v204 = vsel %vm37, 1, 0
  %v205 = vsel %vm38, 1, 0
  %vm206 = vcmp.eq.s32.totalorder %v204, 1
  %vm207 = vcmp.eq.s32.totalorder %v205, 1
  %v208 = vsel %vm206, %v202, 0.0
  %v209 = vsel %vm207, %v203, 0.0
  %210 = vset.pattern.permute.xlu0 5
  %211 = vperm.xlu0 %210, %v24
  %v212 = vpop.permute.xlu0 %211
  %v214 = vmul.f32 %v208, %v212
  %v215 = vmul.f32 %v209, %v212
  %v216 = vadd.f32 %v195, %v214
  %v217 = vadd.f32 %v196, %v215
  %218 = vrot.lane.b32.xlu0 %v105, 113
  %v219 = vpop.permute.xlu0 %218
  %220 = vrot.lane.b32.xlu0 %v106, 113
  %v221 = vpop.permute.xlu0 %220
  %vm222 = vcmp.lt.s32.totalorder %v27, 113
  %v223 = vsel %vm222, %v219, %v221
  %v224 = vsel %vm222, %v221, %v219
  %v225 = vsel %vm43, 1, 0
  %v226 = vsel %vm44, 1, 0
  %vm227 = vcmp.eq.s32.totalorder %v225, 1
  %vm228 = vcmp.eq.s32.totalorder %v226, 1
  %v229 = vsel %vm227, %v223, 0.0
  %v230 = vsel %vm228, %v224, 0.0
  %231 = vset.pattern.permute.xlu0 6
  %232 = vperm.xlu0 %231, %v24
  %v233 = vpop.permute.xlu0 %232
  %v235 = vmul.f32 %v229, %v233
  %v236 = vmul.f32 %v230, %v233
  %v237 = vadd.f32 %v216, %v235
  %v238 = vadd.f32 %v217, %v236
  %239 = vrot.lane.b32.xlu0 %v105, 112
  %v240 = vpop.permute.xlu0 %239
  %241 = vrot.lane.b32.xlu0 %v106, 112
  %v242 = vpop.permute.xlu0 %241
  %vm243 = vcmp.lt.s32.totalorder %v27, 112
  %v244 = vsel %vm243, %v240, %v242
  %v245 = vsel %vm243, %v242, %v240
  %v246 = vsel %vm33, 1, 0
  %v247 = vsel %vm34, 1, 0
  %vm248 = vcmp.eq.s32.totalorder %v246, 1
  %vm249 = vcmp.eq.s32.totalorder %v247, 1
  %v250 = vsel %vm248, %v244, 0.0
  %v251 = vsel %vm249, %v245, 0.0
  %252 = vset.pattern.permute.xlu0 7
  %253 = vperm.xlu0 %252, %v24
  %v254 = vpop.permute.xlu0 %253
  %v256 = vmul.f32 %v250, %v254
  %v257 = vmul.f32 %v251, %v254
  %v258 = vadd.f32 %v237, %v256
  %v259 = vadd.f32 %v238, %v257
  %260 = vrot.lane.b32.xlu0 %v105, 111
  %v261 = vpop.permute.xlu0 %260
  %262 = vrot.lane.b32.xlu0 %v106, 111
  %v263 = vpop.permute.xlu0 %262
  %vm264 = vcmp.lt.s32.totalorder %v27, 111
  %v265 = vsel %vm264, %v261, %v263
  %v266 = vsel %vm264, %v263, %v261
  %v267 = vsel %vm45, 1, 0
  %v268 = vsel %vm46, 1, 0
  %vm269 = vcmp.eq.s32.totalorder %v267, 1
  %vm270 = vcmp.eq.s32.totalorder %v268, 1
  %v271 = vsel %vm269, %v265, 0.0
  %v272 = vsel %vm270, %v266, 0.0
  %273 = vset.pattern.permute.xlu0 8
  %274 = vperm.xlu0 %273, %v24
  %v275 = vpop.permute.xlu0 %274
  %v277 = vmul.f32 %v271, %v275
  %v278 = vmul.f32 %v272, %v275
  %v279 = vadd.f32 %v258, %v277
  %v280 = vadd.f32 %v259, %v278
  %281 = vset.pattern.permute.xlu0 10
  %282 = vperm.xlu0 %281, %v24
  %v283 = vpop.permute.xlu0 %282
  %v285 = vadd.f32 %v279, %v283
  %v286 = vadd.f32 %v280, %v283
  %v287 = vmax.f32 %v285, 0.0
  %v288 = vmax.f32 %v286, 0.0
  %v289 = vpack.c.bf16 %v287, %v287
  %v290 = vpack.c.bf16 %v288, %v288
  %vm291 = vcmask 64512
  %v293 = vsel %vm291, %v23, 0
  %vm295 = vcmask 1043456
  %v297 = vsel %vm295, %v289, 0
  %v300 = vsel %vm295, %v290, 0
  %302 = vmatpush.bf16.msra.mxu0 0
  %303 = vmatpush.bf16.msra.mxu0 0
  %304 = vmatpush.bf16.msra.mxu0 0
  %305 = vmatpush.bf16.msra.mxu0 0
  %306 = vmatpush.bf16.msra.mxu0 0
  %307 = vmatpush.bf16.msra.mxu0 0
  %308 = vmatpush.bf16.msra.mxu0 0
  %309 = vmatpush.bf16.msra.mxu0 %v297
  %310 = vmatmul.bf16.gmra.mxu0 %v293
  %v311 = vpop.f32.mrf.mxu0
  %v312 = vadd.f32 0.0, %v311
  %v313 = vpop.f32.mrf.mxu0
  %314 = vdwg.mxu0
  %315 = vmatpush.bf16.msra.mxu0 0
  %316 = vmatpush.bf16.msra.mxu0 0
  %317 = vmatpush.bf16.msra.mxu0 0
  %318 = vmatpush.bf16.msra.mxu0 0
  %319 = vmatpush.bf16.msra.mxu0 0
  %320 = vmatpush.bf16.msra.mxu0 0
  %321 = vmatpush.bf16.msra.mxu0 0
  %322 = vmatpush.bf16.msra.mxu0 %v300
  %323 = vmatmul.bf16.gmra.mxu0 %v293
  %v324 = vpop.f32.mrf.mxu0
  %v325 = vadd.f32 0.0, %v324
  %v326 = vpop.f32.mrf.mxu0
  %327 = vdwg.mxu0
  %329 = vset.pattern.permute.xlu0 0
  %330 = vperm.xlu0 %329, %v25
  %v331 = vpop.permute.xlu0 %330
  %v333 = vmul.f32 %v82, %v331
  %v334 = vmul.f32 %v96, %v331
  %335 = vset.pattern.permute.xlu0 1
  %336 = vperm.xlu0 %335, %v25
  %v337 = vpop.permute.xlu0 %336
  %v339 = vmul.f32 %v312, %v337
  %v340 = vmul.f32 %v325, %v337
  %v341 = vadd.f32 %v333, %v339
  %v342 = vadd.f32 %v334, %v340
  %343 = vset.pattern.permute.xlu0 2
  %344 = vperm.xlu0 %343, %v25
  %v345 = vpop.permute.xlu0 %344
  %v347 = vadd.f32 %v341, %v345
  %v348 = vadd.f32 %v342, %v345
  %349 = vst [vmem:[%s5] sm:$0xff] %v347
  %350 = vst [vmem:[%s5 + $0x8] sm:$0xff] %v348
  %s351 = scalar_lea.vmem %s0, 8
  %v352 = vld [vmem:[%s351] sm:$0xff]
  %354 = vst [vmem:[#allocation1] ss:$2 sm:$0xff] %v352
  %v355 = vld.sshfl [vmem:[#allocation1] sm:$0xff pattern:$0x75316420]
  %v356 = vld.sshfl [vmem:[#allocation1 + $0x8] sm:$0xff pattern:$0x75316420]
  %v359 = vpack.c.bf16 %v355, %v355
  %v360 = vpack.c.bf16 %v356, %v356
  %v362 = vsel %vm65, %v359, 0
  %v365 = vsel %vm65, %v360, 0
  %367 = vmatpush.bf16.msra.mxu0 0
  %368 = vmatpush.bf16.msra.mxu0 0
  %369 = vmatpush.bf16.msra.mxu0 0
  %370 = vmatpush.bf16.msra.mxu0 0
  %371 = vmatpush.bf16.msra.mxu0 0
  %372 = vmatpush.bf16.msra.mxu0 0
  %373 = vmatpush.bf16.msra.mxu0 0
  %374 = vmatpush.bf16.msra.mxu0 %v362
  %375 = vmatmul.bf16.gmra.mxu0 %v63
  %v376 = vpop.f32.mrf.mxu0
  %v377 = vadd.f32 0.0, %v376
  %v378 = vpop.f32.mrf.mxu0
  %v379 = vadd.f32 0.0, %v378
  %380 = vdwg.mxu0
  %381 = vmatpush.bf16.msra.mxu0 0
  %382 = vmatpush.bf16.msra.mxu0 0
  %383 = vmatpush.bf16.msra.mxu0 0
  %384 = vmatpush.bf16.msra.mxu0 0
  %385 = vmatpush.bf16.msra.mxu0 0
  %386 = vmatpush.bf16.msra.mxu0 0
  %387 = vmatpush.bf16.msra.mxu0 0
  %388 = vmatpush.bf16.msra.mxu0 %v365
  %389 = vmatmul.bf16.gmra.mxu0 %v63
  %v390 = vpop.f32.mrf.mxu0
  %v391 = vadd.f32 0.0, %v390
  %v392 = vpop.f32.mrf.mxu0
  %v393 = vadd.f32 0.0, %v392
  %394 = vdwg.mxu0
  %v395 = vadd.f32 %v379, %v103
  %v396 = vadd.f32 %v393, %v103
  %397 = vrot.lane.b32.xlu0 %v395, 17
  %v398 = vpop.permute.xlu0 %397
  %399 = vrot.lane.b32.xlu0 %v396, 17
  %v400 = vpop.permute.xlu0 %399
  %v401 = vsel %vm111, %v398, %v400
  %v402 = vsel %vm111, %v400, %v398
  %v403 = vsel %vm116, %v402, 0.0
  %v404 = vsel %vm117, %v401, 0.0
  %v405 = vmul.f32 %v403, %v122
  %v406 = vmul.f32 %v404, %v122
  %407 = vrot.lane.b32.xlu0 %v395, 16
  %v408 = vpop.permute.xlu0 %407
  %409 = vrot.lane.b32.xlu0 %v396, 16
  %v410 = vpop.permute.xlu0 %409
  %v411 = vsel %vm130, %v408, %v410
  %v412 = vsel %vm130, %v410, %v408
  %v413 = vsel %vm135, %v412, 0.0
  %v414 = vsel %vm136, %v411, 0.0
  %v415 = vmul.f32 %v413, %v141
  %v416 = vmul.f32 %v414, %v141
  %v417 = vadd.f32 %v405, %v415
  %v418 = vadd.f32 %v406, %v416
  %419 = vrot.lane.b32.xlu0 %v395, 15
  %v420 = vpop.permute.xlu0 %419
  %421 = vrot.lane.b32.xlu0 %v396, 15
  %v422 = vpop.permute.xlu0 %421
  %v423 = vsel %vm151, %v420, %v422
  %v424 = vsel %vm151, %v422, %v420
  %v425 = vsel %vm156, %v424, 0.0
  %v426 = vsel %vm157, %v423, 0.0
  %v427 = vmul.f32 %v425, %v162
  %v428 = vmul.f32 %v426, %v162
  %v429 = vadd.f32 %v417, %v427
  %v430 = vadd.f32 %v418, %v428
  %431 = vrot.lane.b32.xlu0 %v395, 1
  %v432 = vpop.permute.xlu0 %431
  %433 = vrot.lane.b32.xlu0 %v396, 1
  %v434 = vpop.permute.xlu0 %433
  %v435 = vsel %vm172, %v432, %v434
  %v436 = vsel %vm172, %v434, %v432
  %v437 = vsel %vm177, %v436, 0.0
  %v438 = vsel %vm178, %v435, 0.0
  %v439 = vmul.f32 %v437, %v183
  %v440 = vmul.f32 %v438, %v183
  %v441 = vadd.f32 %v429, %v439
  %v442 = vadd.f32 %v430, %v440
  %v443 = vmul.f32 %v395, %v191
  %v444 = vmul.f32 %v396, %v191
  %v445 = vadd.f32 %v441, %v443
  %v446 = vadd.f32 %v442, %v444
  %447 = vrot.lane.b32.xlu0 %v395, 127
  %v448 = vpop.permute.xlu0 %447
  %449 = vrot.lane.b32.xlu0 %v396, 127
  %v450 = vpop.permute.xlu0 %449
  %v451 = vsel %vm201, %v448, %v450
  %v452 = vsel %vm201, %v450, %v448
  %v453 = vsel %vm206, %v451, 0.0
  %v454 = vsel %vm207, %v452, 0.0
  %v455 = vmul.f32 %v453, %v212
  %v456 = vmul.f32 %v454, %v212
  %v457 = vadd.f32 %v445, %v455
  %v458 = vadd.f32 %v446, %v456
  %459 = vrot.lane.b32.xlu0 %v395, 113
  %v460 = vpop.permute.xlu0 %459
  %461 = vrot.lane.b32.xlu0 %v396, 113
  %v462 = vpop.permute.xlu0 %461
  %v463 = vsel %vm222, %v460, %v462
  %v464 = vsel %vm222, %v462, %v460
  %v465 = vsel %vm227, %v463, 0.0
  %v466 = vsel %vm228, %v464, 0.0
  %v467 = vmul.f32 %v465, %v233
  %v468 = vmul.f32 %v466, %v233
  %v469 = vadd.f32 %v457, %v467
  %v470 = vadd.f32 %v458, %v468
  %471 = vrot.lane.b32.xlu0 %v395, 112
  %v472 = vpop.permute.xlu0 %471
  %473 = vrot.lane.b32.xlu0 %v396, 112
  %v474 = vpop.permute.xlu0 %473
  %v475 = vsel %vm243, %v472, %v474
  %v476 = vsel %vm243, %v474, %v472
  %v477 = vsel %vm248, %v475, 0.0
  %v478 = vsel %vm249, %v476, 0.0
  %v479 = vmul.f32 %v477, %v254
  %v480 = vmul.f32 %v478, %v254
  %v481 = vadd.f32 %v469, %v479
  %v482 = vadd.f32 %v470, %v480
  %483 = vrot.lane.b32.xlu0 %v395, 111
  %v484 = vpop.permute.xlu0 %483
  %485 = vrot.lane.b32.xlu0 %v396, 111
  %v486 = vpop.permute.xlu0 %485
  %v487 = vsel %vm264, %v484, %v486
  %v488 = vsel %vm264, %v486, %v484
  %v489 = vsel %vm269, %v487, 0.0
  %v490 = vsel %vm270, %v488, 0.0
  %v491 = vmul.f32 %v489, %v275
  %v492 = vmul.f32 %v490, %v275
  %v493 = vadd.f32 %v481, %v491
  %v494 = vadd.f32 %v482, %v492
  %v495 = vadd.f32 %v493, %v283
  %v496 = vadd.f32 %v494, %v283
  %v497 = vmax.f32 %v495, 0.0
  %v498 = vmax.f32 %v496, 0.0
  %v499 = vpack.c.bf16 %v497, %v497
  %v500 = vpack.c.bf16 %v498, %v498
  %v502 = vsel %vm295, %v499, 0
  %v505 = vsel %vm295, %v500, 0
  %507 = vmatpush.bf16.msra.mxu0 0
  %508 = vmatpush.bf16.msra.mxu0 0
  %509 = vmatpush.bf16.msra.mxu0 0
  %510 = vmatpush.bf16.msra.mxu0 0
  %511 = vmatpush.bf16.msra.mxu0 0
  %512 = vmatpush.bf16.msra.mxu0 0
  %513 = vmatpush.bf16.msra.mxu0 0
  %514 = vmatpush.bf16.msra.mxu0 %v502
  %515 = vmatmul.bf16.gmra.mxu0 %v293
  %v516 = vpop.f32.mrf.mxu0
  %v517 = vadd.f32 0.0, %v516
  %v518 = vpop.f32.mrf.mxu0
  %519 = vdwg.mxu0
  %520 = vmatpush.bf16.msra.mxu0 0
  %521 = vmatpush.bf16.msra.mxu0 0
  %522 = vmatpush.bf16.msra.mxu0 0
  %523 = vmatpush.bf16.msra.mxu0 0
  %524 = vmatpush.bf16.msra.mxu0 0
  %525 = vmatpush.bf16.msra.mxu0 0
  %526 = vmatpush.bf16.msra.mxu0 0
  %527 = vmatpush.bf16.msra.mxu0 %v505
  %528 = vmatmul.bf16.gmra.mxu0 %v293
  %v529 = vpop.f32.mrf.mxu0
  %v530 = vadd.f32 0.0, %v529
  %v531 = vpop.f32.mrf.mxu0
  %532 = vdwg.mxu0
  %v533 = vmul.f32 %v377, %v331
  %v534 = vmul.f32 %v391, %v331
  %v535 = vmul.f32 %v517, %v337
  %v536 = vmul.f32 %v530, %v337
  %v537 = vadd.f32 %v533, %v535
  %v538 = vadd.f32 %v534, %v536
  %v539 = vadd.f32 %v537, %v345
  %v540 = vadd.f32 %v538, %v345
  %s541 = scalar_lea.vmem %s5, 16
  %542 = vst [vmem:[%s541] sm:$0xff] %v539
  %543 = vst [vmem:[%s541 + $0x8] sm:$0xff] %v540
  // Predicated region
  $region22: #{channel_embed_forward.1} parent=0 // pred_check
    _
  $region23: #{channel_embed_forward.1} parent=0 // pred_check_branch
    %545 = sbr.rel (0) target = $region25
  $region24: #{channel_embed_forward.1} parent=0 // pred_region
    _
  $region25: #{channel_embed_forward.1} parent=0 // pred_fallthru
    _
  // Predicated region
  $region26: #{channel_embed_forward.1} parent=0 // pred_check
    _
  $region27: #{channel_embed_forward.1} parent=0 // pred_check_branch
    %547 = sbr.rel (0) target = $region29
  $region28: #{channel_embed_forward.1} parent=0 // pred_region
    _
  $region29: #{channel_embed_forward.1} parent=0 // pred_fallthru
    _

</llo_original>
